<compile_context>
chip_gen: v7x
topology: tpu7x:2x2x1
jax: 0.10.0
libtpu: 0.0.40
codegen_flags: <defaults>
</compile_context>

<pallas_src>
import jax
import jax.numpy as jnp
from jax.experimental import pallas as pl
from jax.experimental.pallas import tpu as pltpu


def _round_up(x, m):
    return (x + m - 1) // m * m


def _dssm_conv_kernel(embs_ref, wconv_t_ref, bconv_ref, wout_t_ref, bout_ref, out_ref):
    # embs_ref : (L, TB, E)   gathered embeddings (compute dtype), L-major
    # wconv_t  : (E, Hp)      Conv1d(k=1) weight^T, lane-padded H (compute dtype)
    # bconv    : (1, Hp)      f32
    # wout_t   : (Hp, Op)     output Linear weight^T (compute dtype)
    # bout     : (1, Op)      f32
    # out_ref  : (TB, Op)     f32
    seq_len, tb, emb = embs_ref.shape
    hp = wconv_t_ref.shape[1]

    e = embs_ref[...].reshape(seq_len * tb, emb)               # free relayout: tb % 8 == 0
    # Conv1d(kernel_size=1) == per-position linear E -> H: one large-M MXU matmul.
    h = jnp.dot(e, wconv_t_ref[...],
                preferred_element_type=jnp.float32)            # (L*TB, Hp) f32 acc
    h = jnp.maximum(h + bconv_ref[...], 0.0)                   # bias + ReLU

    # Max over the sequence: elementwise maxima over L contiguous (TB, Hp) slabs.
    pooled = h.reshape(seq_len, tb, hp).max(axis=0)            # (TB, Hp) f32

    o = jnp.dot(pooled.astype(wout_t_ref.dtype), wout_t_ref[...],
                preferred_element_type=jnp.float32)            # (TB, Op) f32
    out_ref[...] = (o + bout_ref[...]).astype(out_ref.dtype)


def _dssm_pool_kernel(h_ref, wout_t_ref, bout_ref, out_ref):
    # h_ref : (L, TB, Hp) pre-activated per-position hidden (compute dtype)
    pooled = h_ref[...].max(axis=0)                            # (TB, Hp), elementwise maxima
    o = jnp.dot(pooled, wout_t_ref[...],
                preferred_element_type=jnp.float32)            # (TB, Op) f32
    out_ref[...] = (o + bout_ref[...]).astype(out_ref.dtype)


def dssm_encoder(inputs, embeddings, w_conv, b_conv, w_out, b_out,
                 *, block_batch=None, compute_dtype=jnp.bfloat16,
                 project_table=None):
    """inputs: (B, L) int32 token ids; embeddings: (V, E) f32. Returns (B, O) f32."""
    B, L = inputs.shape
    V, E = embeddings.shape
    H = w_conv.shape[0]
    O = w_out.shape[0]

    h_pad = _round_up(H, 128)
    o_pad = _round_up(O, 128)
    elt = jnp.dtype(compute_dtype).itemsize

    # Small-vocab algorithmic shortcut: project the whole embedding table through
    # the conv once (V rows) instead of B*L rows.
    if project_table is None:
        project_table = V < _round_up(B, 8) * L
    in_width = h_pad if project_table else E

    # --- row tile: TB batch elements (L*TB rows) per grid step -----------------
    if block_batch is None:
        tb = _round_up(max(1, 2048 // max(L, 1)), 8)           # ~2K rows / step
    else:
        tb = _round_up(block_batch, 8)
    # VMEM budget for the double-buffered tiles (safe on v7x's 64 MiB VMEM too).
    per_elem = 2 * (L * in_width * elt) + 2 * (o_pad * 4)
    tb = min(tb, max(8, (24 * 1024 * 1024 // max(per_elem, 1)) // 8 * 8))
    tb = min(tb, _round_up(B, 8))
    # Prefer >= 2 grid steps so both v7x TensorCores get work ("parallel" axis).
    if tb > 8 and _round_up(B, tb) == tb:
        tb = max(8, _round_up((B + 1) // 2, 8))
    b_pad = _round_up(B, tb)

    # Pad the tiny id matrix (NOT the gathered activations); transpose to L-major.
    if b_pad != B:
        inputs = jnp.pad(inputs, ((0, b_pad - B), (0, 0)))     # token id 0 is valid
    ids_t = inputs.T                                           # (L, B_pad)

    # --- weights (zero lane-padding is exact through bias/ReLU/max) ------------
    wout_t = jnp.pad(w_out.T, ((0, h_pad - H), (0, o_pad - O))).astype(compute_dtype)
    bout = jnp.pad(b_out, (0, o_pad - O)).reshape(1, o_pad).astype(jnp.float32)

    grid = (b_pad // tb,)
    weight_bytes = E * h_pad * elt + h_pad * 4 + h_pad * o_pad * elt + o_pad * 4
    scratch_bytes = L * tb * h_pad * 4 + tb * h_pad * 4        # f32 intermediates
    vmem_limit = int(min(max(
        2 * (tb * L * in_width * elt) + 2 * (tb * o_pad * 4)
        + weight_bytes + scratch_bytes + (16 << 20),
        32 << 20), 64 << 20))
    cparams = pltpu.CompilerParams(dimension_semantics=("parallel",),
                                   vmem_limit_bytes=vmem_limit)

    # TODO(synk): for large E (>=128) fuse the gather into the kernel (scalar-prefetched
    # ids + embeddings in memory_space=pl.ANY + manual double-buffered DMA gather) to
    # remove the gathered tensor's extra HBM write+read.
    if project_table:
        table = jnp.maximum(embeddings @ w_conv.T + b_conv, 0.0)       # (V, H) f32
        table = jnp.pad(table, ((0, 0), (0, h_pad - H))).astype(compute_dtype)
        acts = table[ids_t]                                            # (L, B_pad, Hp)
        out = pl.pallas_call(
            _dssm_pool_kernel,
            out_shape=jax.ShapeDtypeStruct((b_pad, o_pad), jnp.float32),
            grid_spec=pltpu.PrefetchScalarGridSpec(
                num_scalar_prefetch=0,
                grid=grid,
                in_specs=[
                    pl.BlockSpec((L, tb, h_pad), lambda i: (0, i, 0)),  # row tile
                    pl.BlockSpec((h_pad, o_pad), lambda i: (0, 0)),     # resident weight
                    pl.BlockSpec((1, o_pad), lambda i: (0, 0)),         # resident bias
                ],
                out_specs=pl.BlockSpec((tb, o_pad), lambda i: (i, 0)),
            ),
            compiler_params=cparams,
        )(acts, wout_t, bout)
    else:
        wconv_t = jnp.pad(w_conv.T, ((0, 0), (0, h_pad - H))).astype(compute_dtype)
        bconv = jnp.pad(b_conv, (0, h_pad - H)).reshape(1, h_pad).astype(jnp.float32)
        acts = embeddings.astype(compute_dtype)[ids_t]                  # (L, B_pad, E)
        out = pl.pallas_call(
            _dssm_conv_kernel,
            out_shape=jax.ShapeDtypeStruct((b_pad, o_pad), jnp.float32),
            grid_spec=pltpu.PrefetchScalarGridSpec(
                num_scalar_prefetch=0,
                grid=grid,
                in_specs=[
                    pl.BlockSpec((L, tb, E), lambda i: (0, i, 0)),      # row tile
                    pl.BlockSpec((E, h_pad), lambda i: (0, 0)),         # conv weight^T
                    pl.BlockSpec((1, h_pad), lambda i: (0, 0)),         # conv bias
                    pl.BlockSpec((h_pad, o_pad), lambda i: (0, 0)),     # out weight^T
                    pl.BlockSpec((1, o_pad), lambda i: (0, 0)),         # out bias
                ],
                out_specs=pl.BlockSpec((tb, o_pad), lambda i: (i, 0)),
            ),
            compiler_params=cparams,
        )(acts, wconv_t, bconv, wout_t, bout)
    return out[:B, :O]


def reference(inputs, embeddings, w_conv, b_conv, w_out, b_out):
    embs = embeddings[inputs]                                  # (B, L, E)
    h = jnp.einsum("ble,he->blh", embs, w_conv) + b_conv       # conv1d k=1
    h = jnp.maximum(h, 0.0)
    pooled = jnp.max(h, axis=1)                                # max over seq (L)
    return pooled @ w_out.T + b_out


if __name__ == "__main__":
    key = jax.random.PRNGKey(0)
    k_emb, k_tok, k_wc, k_bc, k_wo, k_bo = jax.random.split(key, 6)

    B, L = 2, 8          # batch, sequence length
    V, E = 50, 16        # vocab size, embedding dim
    H, O = 32, 32        # hidden_dim, output_dim

    embeddings = jax.random.normal(k_emb, (V, E), dtype=jnp.float32)
    inputs = jax.random.randint(k_tok, (B, L), 0, V, dtype=jnp.int32)

    # Deterministic synthetic parameters (shapes follow the PyTorch module).
    w_conv = jax.random.normal(k_wc, (H, E), dtype=jnp.float32) * 0.1   # Conv1d weight (k=1)
    b_conv = jax.random.normal(k_bc, (H,), dtype=jnp.float32) * 0.1
    w_out = jax.random.normal(k_wo, (O, H), dtype=jnp.float32) * 0.1    # Linear weight
    b_out = jax.random.normal(k_bo, (O,), dtype=jnp.float32) * 0.1

    ref = reference(inputs, embeddings, w_conv, b_conv, w_out, b_out)

    # Exact-semantics check: f32 compute, full conv-in-kernel path.
    out_f32 = dssm_encoder(inputs, embeddings, w_conv, b_conv, w_out, b_out,
                           compute_dtype=jnp.float32, project_table=False)
    out_f32 = jax.block_until_ready(out_f32)
    assert out_f32.shape == (B, O)
    assert jnp.allclose(out_f32, ref, atol=1e-5, rtol=1e-5), "f32 conv path mismatch"

    # Default bandwidth-optimized conv path (bf16 activations/weights, f32 accumulate).
    out_bf16 = dssm_encoder(inputs, embeddings, w_conv, b_conv, w_out, b_out,
                            project_table=False)
    out_bf16 = jax.block_until_ready(out_bf16)
    assert out_bf16.shape == (B, O)
    assert jnp.allclose(out_bf16, ref, atol=5e-2, rtol=5e-2), "bf16 conv path mismatch"

    # Small-vocab projected-table path (auto-selected here since V < B_pad*L).
    out_tbl = dssm_encoder(inputs, embeddings, w_conv, b_conv, w_out, b_out)
    out_tbl = jax.block_until_ready(out_tbl)
    assert out_tbl.shape == (B, O)
    assert jnp.allclose(out_tbl, ref, atol=5e-2, rtol=5e-2), "projected-table path mismatch"

    print("KERNEL_OK")
</pallas_src>

<mosaic_0001>
module attributes {stable_mosaic.version = 11 : i64} {
  func.func @_dssm_conv_kernel(%arg0: i32, %arg1: memref<8x8x16xf32, #tpu.memory_space<vmem>>, %arg2: memref<16x128xf32, #tpu.memory_space<vmem>>, %arg3: memref<1x128xf32, #tpu.memory_space<vmem>>, %arg4: memref<128x128xf32, #tpu.memory_space<vmem>>, %arg5: memref<1x128xf32, #tpu.memory_space<vmem>>, %arg6: memref<8x128xf32, #tpu.memory_space<vmem>>) attributes {dimension_semantics = [#tpu.dimension_semantics<parallel>], iteration_bounds = array<i64: 1>, scalar_prefetch = 0 : i64, scratch_operands = 0 : i64, tpu.core_type = #tpu.core_type<tc>, window_params = [{transform_indices = @transform_0, window_bounds = array<i64: 8, 8, 16>}, {pipeline_mode = #tpu.pipeline_mode<synchronous>, transform_indices = @transform_1, window_bounds = array<i64: 16, 128>}, {pipeline_mode = #tpu.pipeline_mode<synchronous>, transform_indices = @transform_2, window_bounds = array<i64: 1, 128>}, {pipeline_mode = #tpu.pipeline_mode<synchronous>, transform_indices = @transform_3, window_bounds = array<i64: 128, 128>}, {pipeline_mode = #tpu.pipeline_mode<synchronous>, transform_indices = @transform_4, window_bounds = array<i64: 1, 128>}, {transform_indices = @transform_5, window_bounds = array<i64: 8, 128>}]} {
    %c0 = arith.constant 0 : index
    %c0_0 = arith.constant 0 : index
    %c0_1 = arith.constant 0 : index
    %0 = vector.load %arg1[%c0, %c0_0, %c0_1] : memref<8x8x16xf32, #tpu.memory_space<vmem>>, vector<8x8x16xf32>
    %1 = vector.shape_cast %0 : vector<8x8x16xf32> to vector<64x16xf32>
    %c0_2 = arith.constant 0 : index
    %c0_3 = arith.constant 0 : index
    %2 = vector.load %arg2[%c0_2, %c0_3] : memref<16x128xf32, #tpu.memory_space<vmem>>, vector<16x128xf32>
    %cst = arith.constant dense<0.000000e+00> : vector<64x128xf32>
    %3 = tpu.matmul %1, %2, %cst {dimension_numbers = #tpu.dot_dimension_numbers<[1], [0], [0], [1], [0, 0, 1, 1], [], []>} : vector<64x16xf32>, vector<16x128xf32>, vector<64x128xf32> -> vector<64x128xf32>
    %c0_4 = arith.constant 0 : index
    %c0_5 = arith.constant 0 : index
    %4 = vector.load %arg3[%c0_4, %c0_5] : memref<1x128xf32, #tpu.memory_space<vmem>>, vector<1x128xf32>
    %5 = vector.broadcast %4 : vector<1x128xf32> to vector<64x128xf32>
    %6 = arith.addf %3, %5 : vector<64x128xf32>
    %cst_6 = arith.constant 0.000000e+00 : f32
    %7 = vector.broadcast %cst_6 : f32 to vector<64x128xf32>
    %8 = arith.maximumf %6, %7 : vector<64x128xf32>
    %9 = vector.shape_cast %8 : vector<64x128xf32> to vector<8x8x128xf32>
    %cst_7 = arith.constant dense<0xFF800000> : vector<8x128xf32>
    %10 = vector.multi_reduction <maximumf>, %9, %cst_7 [0] : vector<8x8x128xf32> to vector<8x128xf32>
    %c0_8 = arith.constant 0 : index
    %c0_9 = arith.constant 0 : index
    %11 = vector.load %arg4[%c0_8, %c0_9] : memref<128x128xf32, #tpu.memory_space<vmem>>, vector<128x128xf32>
    %cst_10 = arith.constant dense<0.000000e+00> : vector<8x128xf32>
    %12 = tpu.matmul %10, %11, %cst_10 {dimension_numbers = #tpu.dot_dimension_numbers<[1], [0], [0], [1], [0, 0, 1, 1], [], []>} : vector<8x128xf32>, vector<128x128xf32>, vector<8x128xf32> -> vector<8x128xf32>
    %c0_11 = arith.constant 0 : index
    %c0_12 = arith.constant 0 : index
    %13 = vector.load %arg5[%c0_11, %c0_12] : memref<1x128xf32, #tpu.memory_space<vmem>>, vector<1x128xf32>
    %14 = vector.broadcast %13 : vector<1x128xf32> to vector<8x128xf32>
    %15 = arith.addf %12, %14 : vector<8x128xf32>
    %c0_13 = arith.constant 0 : index
    %c0_14 = arith.constant 0 : index
    %16 = vector.load %arg6[%c0_13, %c0_14] : memref<8x128xf32, #tpu.memory_space<vmem>>, vector<8x128xf32>
    tpu.vector_store %arg6[%c0_13, %c0_14], %15 {strides = array<i32>} : memref<8x128xf32, #tpu.memory_space<vmem>>, vector<8x128xf32>,
    return
  }
  func.func @transform_0(%arg0: i32) -> (i32, i32, i32) {
    %c0_i32 = arith.constant 0 : i32
    %c0_i32_0 = arith.constant 0 : i32
    %c0_i32_1 = arith.constant 0 : i32
    return %c0_i32, %arg0, %c0_i32_0 : i32, i32, i32
  }
  func.func @transform_1(%arg0: i32) -> (i32, i32) {
    %c0_i32 = arith.constant 0 : i32
    %c0_i32_0 = arith.constant 0 : i32
    %c0_i32_1 = arith.constant 0 : i32
    return %c0_i32, %c0_i32_0 : i32, i32
  }
  func.func @transform_2(%arg0: i32) -> (i32, i32) {
    %c0_i32 = arith.constant 0 : i32
    %c0_i32_0 = arith.constant 0 : i32
    %c0_i32_1 = arith.constant 0 : i32
    return %c0_i32, %c0_i32_0 : i32, i32
  }
  func.func @transform_3(%arg0: i32) -> (i32, i32) {
    %c0_i32 = arith.constant 0 : i32
    %c0_i32_0 = arith.constant 0 : i32
    %c0_i32_1 = arith.constant 0 : i32
    return %c0_i32, %c0_i32_0 : i32, i32
  }
  func.func @transform_4(%arg0: i32) -> (i32, i32) {
    %c0_i32 = arith.constant 0 : i32
    %c0_i32_0 = arith.constant 0 : i32
    %c0_i32_1 = arith.constant 0 : i32
    return %c0_i32, %c0_i32_0 : i32, i32
  }
  func.func @transform_5(%arg0: i32) -> (i32, i32) {
    %c0_i32 = arith.constant 0 : i32
    %c0_i32_0 = arith.constant 0 : i32
    return %arg0, %c0_i32 : i32, i32
  }
}

</mosaic_0001>

<llo_original>
// kernel: tpu_custom_call.1
$region0: #{tpu_custom_call.1}
  #allocation0 [shape = 'u32[]', space=smem, size = 0x4, offset = 0x4, fixed_abs, tag = 'smem constant byte address 0x4 - core index']
  #allocation1 [shape = 'u32[144,128]{1,0:T(1,128)}', space=vmem, size = 0x12000, scoped, tag = 'internal scratch']
  %s0 = inlined_call_operand.hbm [shape: f32[8,8,16], index: 0, kind: input, shape index: {}]
  %s1 = inlined_call_operand.hbm [shape: f32[16,128], index: 1, kind: input, shape index: {}]
  %s2 = inlined_call_operand.vmem [shape: f32[1,128], index: 2, kind: input, shape index: {}]
  %s3 = inlined_call_operand.hbm [shape: f32[128,128], index: 3, kind: input, shape index: {}]
  %s4 = inlined_call_operand.vmem [shape: f32[1,128], index: 4, kind: input, shape index: {}]
  %s5 = inlined_call_operand.hbm [shape: f32[8,128], index: 5, kind: output, shape index: {}]
  %s6 = sld [smem:[#allocation0]]
  $region42: #{tpu_custom_call.1} parent=0
    _
  %s8 = ssub.s32 1, %s6
  %s9 = scalar_select 0, %s8, %s6
  $region1: #{tpu_custom_call.1} parent=0
    #allocation2 [shape = 'u8[32768]{0}', space=vmem, size = 0x8000, scoped, tag = 'input window, operand 0, single buffered']
    #allocation3 [shape = 's32[1]{0}', space=sflag, size = 0x4, scoped, tag = 'scoped memory for tpu_custom_call.1']
    #allocation4 [shape = 's32[1]{0}', space=sflag, size = 0x4, scoped, tag = 'scoped memory for tpu_custom_call.1']
    #allocation5 [shape = 'u8[8192]{0}', space=vmem, size = 0x2000, scoped, tag = 'input window, operand 1, single buffered']
    #allocation6 [shape = 's32[1]{0}', space=sflag, size = 0x4, scoped, tag = 'scoped memory for tpu_custom_call.1']
    #allocation7 [shape = 'u8[65536]{0}', space=vmem, size = 0x10000, scoped, tag = 'input window, operand 3, single buffered']
    #allocation8 [shape = 'u8[4096]{0}', space=vmem, size = 0x1000, scoped, tag = 'output window, operand 0, single buffered']
    %10 = vsyncpa [#allocation3], 0
    %11 = vsyncpa [#allocation6], 0
    %12 = vsyncpa [#allocation4], 0
    // Predicated region
    $region2: #{tpu_custom_call.1} parent=1 // pred_check
      _
    $region3: #{tpu_custom_call.1} parent=1 // pred_check_branch
      %14 = sbr.rel (0) target = $region5
    $region4: #{tpu_custom_call.1} parent=1 // pred_region
      %s16 = ssub.s32 1024, 1024
      %17 = vsyncadd [#allocation3], %s16
      %s18 = sshll.u32 [#allocation2], 4
      %s19 = int_to_ptr.vmem [resolvable:$true] %s18
      %24 = dma.hbm_to_vmem [thread:$0]  %s0, 1024, %s19, [#allocation3], 128, 128, 8
    $region5: #{tpu_custom_call.1} parent=1 // pred_fallthru
      _
    // Predicated region
    $region6: #{tpu_custom_call.1} parent=1 // pred_check
      _
    $region7: #{tpu_custom_call.1} parent=1 // pred_check_branch
      %26 = sbr.rel (0) target = $region9
    $region8: #{tpu_custom_call.1} parent=1 // pred_region
      %s28 = ssub.s32 256, 256
      %29 = vsyncadd [#allocation6], %s28
      %s30 = sshll.u32 [#allocation5], 4
      %s31 = int_to_ptr.vmem [resolvable:$true] %s30
      %36 = dma.hbm_to_vmem [thread:$0]  %s1, 256, %s31, [#allocation6], 128, 128, 8
    $region9: #{tpu_custom_call.1} parent=1 // pred_fallthru
      _
    // Predicated region
    $region10: #{tpu_custom_call.1} parent=1 // pred_check
      _
    $region11: #{tpu_custom_call.1} parent=1 // pred_check_branch
      %38 = sbr.rel (0) target = $region13
    $region12: #{tpu_custom_call.1} parent=1 // pred_region
      _
    $region13: #{tpu_custom_call.1} parent=1 // pred_fallthru
      _
    // Predicated region
    $region14: #{tpu_custom_call.1} parent=1 // pred_check
      _
    $region15: #{tpu_custom_call.1} parent=1 // pred_check_branch
      %40 = sbr.rel (0) target = $region17
    $region16: #{tpu_custom_call.1} parent=1 // pred_region
      %s42 = ssub.s32 2048, 2048
      %43 = vsyncadd [#allocation6], %s42
      %s44 = sshll.u32 [#allocation7], 4
      %s45 = int_to_ptr.vmem [resolvable:$true] %s44
      %50 = dma.hbm_to_vmem [thread:$0]  %s3, 2048, %s45, [#allocation6], 128, 128, 8
    $region17: #{tpu_custom_call.1} parent=1 // pred_fallthru
      _
    // Predicated region
    $region18: #{tpu_custom_call.1} parent=1 // pred_check
      _
    $region19: #{tpu_custom_call.1} parent=1 // pred_check_branch
      %52 = sbr.rel (0) target = $region21
    $region20: #{tpu_custom_call.1} parent=1 // pred_region
      _
    $region21: #{tpu_custom_call.1} parent=1 // pred_fallthru
      _
    // Predicated region
    $region22: #{tpu_custom_call.1} parent=1 // pred_check
      _
    $region23: #{tpu_custom_call.1} parent=1 // pred_check_branch
      %54 = sbr.rel (0) target = $region25
    $region24: #{tpu_custom_call.1} parent=1 // pred_region
      %55 = dma.done [#allocation3], 1024
    $region25: #{tpu_custom_call.1} parent=1 // pred_fallthru
      _
    // Predicated region
    $region26: #{tpu_custom_call.1} parent=1 // pred_check
      _
    $region27: #{tpu_custom_call.1} parent=1 // pred_check_branch
      %57 = sbr.rel (0) target = $region29
    $region28: #{tpu_custom_call.1} parent=1 // pred_region
      %58 = dma.done [#allocation6], 256
    $region29: #{tpu_custom_call.1} parent=1 // pred_fallthru
      _
    // Predicated region
    $region30: #{tpu_custom_call.1} parent=1 // pred_check
      _
    $region31: #{tpu_custom_call.1} parent=1 // pred_check_branch
      %60 = sbr.rel (0) target = $region33
    $region32: #{tpu_custom_call.1} parent=1 // pred_region
      %61 = dma.done [#allocation6], 2048
    $region33: #{tpu_custom_call.1} parent=1 // pred_fallthru
      _
    %v62 = vld [vmem:[#allocation2] sm:$0xff]
    %v63 = vld [vmem:[#allocation2 + $0x8] sm:$0xff]
    %v64 = vld [vmem:[#allocation2 + $0x10] sm:$0xff]
    %v65 = vld [vmem:[#allocation2 + $0x18] sm:$0xff]
    %v66 = vld [vmem:[#allocation2 + $0x20] sm:$0xff]
    %v67 = vld [vmem:[#allocation2 + $0x28] sm:$0xff]
    %v68 = vld [vmem:[#allocation2 + $0x30] sm:$0xff]
    %v69 = vld [vmem:[#allocation2 + $0x38] sm:$0xff]
    %v70 = vld [vmem:[#allocation5] sm:$0xff]
    %v71 = vld [vmem:[#allocation5 + $0x8] sm:$0xff]
    %v72 = vld [vmem:[%s2] sm:$0x1]
    %v74 = vlaneseq
    %v75 = vshrl.u32 %v74, 7
    %v76 = vsub.s32 0, %v75
    %v77 = vrot.slane %v72, %v76
    %vm79 = vcmask 130048
    %v81 = vsel %vm79, %v62, 0
    %v84 = vsel %vm79, %v63, 0
    %v87 = vsel %vm79, %v64, 0
    %v90 = vsel %vm79, %v65, 0
    %v93 = vsel %vm79, %v66, 0
    %v96 = vsel %vm79, %v67, 0
    %v99 = vsel %vm79, %v68, 0
    %v102 = vsel %vm79, %v69, 0
    %104 = vmatprep.subr.mxu0 0.0
    %105 = vmatpush1.msra.mxu0 %v70
    %106 = vmatprep.subr.mxu0 0.0
    %107 = vmatpush1.msra.mxu0 %v71
    %108 = vmatprep.subr.mxu0 0.0
    %109 = vmatpush1.msra.mxu0 0.0
    %110 = vmatprep.subr.mxu0 0.0
    %111 = vmatpush1.msra.mxu0 0.0
    %112 = vmatprep.subr.mxu0 0.0
    %113 = vmatpush1.msra.mxu0 0.0
    %114 = vmatprep.subr.mxu0 0.0
    %115 = vmatpush1.msra.mxu0 0.0
    %116 = vmatprep.subr.mxu0 0.0
    %117 = vmatpush1.msra.mxu0 0.0
    %118 = vmatprep.subr.mxu0 0.0
    %119 = vmatpush1.msra.mxu0 0.0
    %120 = vmatprep.subr.mxu0 0.0
    %121 = vmatpush1.msra.mxu0 0.0
    %122 = vmatprep.subr.mxu0 0.0
    %123 = vmatpush1.msra.mxu0 0.0
    %124 = vmatprep.subr.mxu0 0.0
    %125 = vmatpush1.msra.mxu0 0.0
    %126 = vmatprep.subr.mxu0 0.0
    %127 = vmatpush1.msra.mxu0 0.0
    %128 = vmatprep.subr.mxu0 0.0
    %129 = vmatpush1.msra.mxu0 0.0
    %130 = vmatprep.subr.mxu0 0.0
    %131 = vmatpush1.msra.mxu0 0.0
    %132 = vmatprep.subr.mxu0 0.0
    %133 = vmatpush1.msra.mxu0 0.0
    %134 = vmatprep.subr.mxu0 0.0
    %135 = vmatpush1.msra.mxu0 0.0
    %136 = vmatprep.subr.mxu0 0.0
    %137 = vmatpush1.msra.mxu0 0.0
    %138 = vmatprep.subr.mxu0 0.0
    %139 = vmatpush1.msra.mxu0 0.0
    %140 = vmatprep.subr.mxu0 0.0
    %141 = vmatpush1.msra.mxu0 0.0
    %142 = vmatprep.subr.mxu0 0.0
    %143 = vmatpush1.msra.mxu0 0.0
    %144 = vmatprep.subr.mxu0 0.0
    %145 = vmatpush1.msra.mxu0 0.0
    %146 = vmatprep.subr.mxu0 0.0
    %147 = vmatpush1.msra.mxu0 0.0
    %148 = vmatprep.subr.mxu0 0.0
    %149 = vmatpush1.msra.mxu0 0.0
    %150 = vmatprep.subr.mxu0 0.0
    %151 = vmatpush1.msra.mxu0 0.0
    %152 = vmatprep.subr.mxu0 0.0
    %153 = vmatpush1.msra.mxu0 0.0
    %154 = vmatprep.subr.mxu0 0.0
    %155 = vmatpush1.msra.mxu0 0.0
    %156 = vmatprep.subr.mxu0 0.0
    %157 = vmatpush1.msra.mxu0 0.0
    %158 = vmatprep.subr.mxu0 0.0
    %159 = vmatpush1.msra.mxu0 0.0
    %160 = vmatprep.subr.mxu0 0.0
    %161 = vmatpush1.msra.mxu0 0.0
    %162 = vmatprep.subr.mxu0 0.0
    %163 = vmatpush1.msra.mxu0 0.0
    %164 = vmatprep.subr.mxu0 0.0
    %165 = vmatpush1.msra.mxu0 0.0
    %166 = vmatprep.subr.mxu0 0.0
    %167 = vmatpush1.msra.mxu0 0.0
    %168 = vmatprep.mubr.f32.mxu0 0.0
    %169 = vmatmul.mubr.f32.gmra.mrb[0].mxu0 %v81
    %v170 = vpop.f32.mrb[0].mxu0
    %v171 = vadd.f32 %v77, %v170
    %v172 = vpop.f32.mrb[0].mxu0
    %173 = vmatprep.mubr.f32.mxu0 0.0
    %174 = vmatmul.mubr.f32.gmra.mrb[0].mxu0 %v84
    %v175 = vpop.f32.mrb[0].mxu0
    %v176 = vadd.f32 %v77, %v175
    %v177 = vpop.f32.mrb[0].mxu0
    %178 = vmatprep.mubr.f32.mxu0 0.0
    %179 = vmatmul.mubr.f32.gmra.mrb[0].mxu0 %v87
    %v180 = vpop.f32.mrb[0].mxu0
    %v181 = vadd.f32 %v77, %v180
    %v182 = vpop.f32.mrb[0].mxu0
    %183 = vmatprep.mubr.f32.mxu0 0.0
    %184 = vmatmul.mubr.f32.gmra.mrb[0].mxu0 %v90
    %v185 = vpop.f32.mrb[0].mxu0
    %v186 = vadd.f32 %v77, %v185
    %v187 = vpop.f32.mrb[0].mxu0
    %188 = vmatprep.mubr.f32.mxu0 0.0
    %189 = vmatmul.mubr.f32.gmra.mrb[0].mxu0 %v93
    %v190 = vpop.f32.mrb[0].mxu0
    %v191 = vadd.f32 %v77, %v190
    %v192 = vpop.f32.mrb[0].mxu0
    %193 = vmatprep.mubr.f32.mxu0 0.0
    %194 = vmatmul.mubr.f32.gmra.mrb[0].mxu0 %v96
    %v195 = vpop.f32.mrb[0].mxu0
    %v196 = vadd.f32 %v77, %v195
    %v197 = vpop.f32.mrb[0].mxu0
    %198 = vmatprep.mubr.f32.mxu0 0.0
    %199 = vmatmul.mubr.f32.gmra.mrb[0].mxu0 %v99
    %v200 = vpop.f32.mrb[0].mxu0
    %v201 = vadd.f32 %v77, %v200
    %v202 = vpop.f32.mrb[0].mxu0
    %203 = vmatprep.mubr.f32.mxu0 0.0
    %204 = vmatmul.mubr.f32.gmra.mrb[0].mxu0 %v102
    %v205 = vpop.f32.mrb[0].mxu0
    %v206 = vadd.f32 %v77, %v205
    %v207 = vpop.f32.mrb[0].mxu0
    %208 = vdwg.mxu0
    %v209 = vmax.f32 %v171, 0.0
    %v210 = vmax.f32 %v176, 0.0
    %v211 = vmax.f32 %v181, 0.0
    %v212 = vmax.f32 %v186, 0.0
    %v213 = vmax.f32 %v191, 0.0
    %v214 = vmax.f32 %v196, 0.0
    %v215 = vmax.f32 %v201, 0.0
    %v216 = vmax.f32 %v206, 0.0
    %v217 = vmax.f32 %v209, %v213
    %v218 = vmax.f32 %v210, %v214
    %v219 = vmax.f32 %v211, %v215
    %v220 = vmax.f32 %v212, %v216
    %v221 = vmax.f32 %v217, %v218
    %v222 = vmax.f32 %v219, %v220
    %v223 = vmax.f32 %v221, %v222
    %v224 = vld [vmem:[#allocation7] sm:$0xff]
    %v225 = vld [vmem:[#allocation7 + $0x8] sm:$0xff]
    %v226 = vld [vmem:[#allocation7 + $0x10] sm:$0xff]
    %v227 = vld [vmem:[#allocation7 + $0x18] sm:$0xff]
    %v228 = vld [vmem:[#allocation7 + $0x20] sm:$0xff]
    %v229 = vld [vmem:[#allocation7 + $0x28] sm:$0xff]
    %v230 = vld [vmem:[#allocation7 + $0x30] sm:$0xff]
    %v231 = vld [vmem:[#allocation7 + $0x38] sm:$0xff]
    %v232 = vld [vmem:[#allocation7 + $0x40] sm:$0xff]
    %v233 = vld [vmem:[#allocation7 + $0x48] sm:$0xff]
    %v234 = vld [vmem:[#allocation7 + $0x50] sm:$0xff]
    %v235 = vld [vmem:[#allocation7 + $0x58] sm:$0xff]
    %v236 = vld [vmem:[#allocation7 + $0x60] sm:$0xff]
    %v237 = vld [vmem:[#allocation7 + $0x68] sm:$0xff]
    %v238 = vld [vmem:[#allocation7 + $0x70] sm:$0xff]
    %v239 = vld [vmem:[#allocation7 + $0x78] sm:$0xff]
    %v240 = vld [vmem:[%s4] sm:$0x1]
    %v242 = vlaneseq
    %v243 = vshrl.u32 %v242, 7
    %v244 = vsub.s32 0, %v243
    %v245 = vrot.slane %v240, %v244
    %247 = vmatprep.subr.mxu0 0.0
    %248 = vmatpush1.msra.mxu0 %v224
    %249 = vmatprep.subr.mxu0 0.0
    %250 = vmatpush1.msra.mxu0 %v225
    %251 = vmatprep.subr.mxu0 0.0
    %252 = vmatpush1.msra.mxu0 %v226
    %253 = vmatprep.subr.mxu0 0.0
    %254 = vmatpush1.msra.mxu0 %v227
    %255 = vmatprep.subr.mxu0 0.0
    %256 = vmatpush1.msra.mxu0 %v228
    %257 = vmatprep.subr.mxu0 0.0
    %258 = vmatpush1.msra.mxu0 %v229
    %259 = vmatprep.subr.mxu0 0.0
    %260 = vmatpush1.msra.mxu0 %v230
    %261 = vmatprep.subr.mxu0 0.0
    %262 = vmatpush1.msra.mxu0 %v231
    %263 = vmatprep.subr.mxu0 0.0
    %264 = vmatpush1.msra.mxu0 %v232
    %265 = vmatprep.subr.mxu0 0.0
    %266 = vmatpush1.msra.mxu0 %v233
    %267 = vmatprep.subr.mxu0 0.0
    %268 = vmatpush1.msra.mxu0 %v234
    %269 = vmatprep.subr.mxu0 0.0
    %270 = vmatpush1.msra.mxu0 %v235
    %271 = vmatprep.subr.mxu0 0.0
    %272 = vmatpush1.msra.mxu0 %v236
    %273 = vmatprep.subr.mxu0 0.0
    %274 = vmatpush1.msra.mxu0 %v237
    %275 = vmatprep.subr.mxu0 0.0
    %276 = vmatpush1.msra.mxu0 %v238
    %277 = vmatprep.subr.mxu0 0.0
    %278 = vmatpush1.msra.mxu0 %v239
    %279 = vmatprep.subr.mxu0 0.0
    %280 = vmatpush1.msra.mxu0 0.0
    %281 = vmatprep.subr.mxu0 0.0
    %282 = vmatpush1.msra.mxu0 0.0
    %283 = vmatprep.subr.mxu0 0.0
    %284 = vmatpush1.msra.mxu0 0.0
    %285 = vmatprep.subr.mxu0 0.0
    %286 = vmatpush1.msra.mxu0 0.0
    %287 = vmatprep.subr.mxu0 0.0
    %288 = vmatpush1.msra.mxu0 0.0
    %289 = vmatprep.subr.mxu0 0.0
    %290 = vmatpush1.msra.mxu0 0.0
    %291 = vmatprep.subr.mxu0 0.0
    %292 = vmatpush1.msra.mxu0 0.0
    %293 = vmatprep.subr.mxu0 0.0
    %294 = vmatpush1.msra.mxu0 0.0
    %295 = vmatprep.subr.mxu0 0.0
    %296 = vmatpush1.msra.mxu0 0.0
    %297 = vmatprep.subr.mxu0 0.0
    %298 = vmatpush1.msra.mxu0 0.0
    %299 = vmatprep.subr.mxu0 0.0
    %300 = vmatpush1.msra.mxu0 0.0
    %301 = vmatprep.subr.mxu0 0.0
    %302 = vmatpush1.msra.mxu0 0.0
    %303 = vmatprep.subr.mxu0 0.0
    %304 = vmatpush1.msra.mxu0 0.0
    %305 = vmatprep.subr.mxu0 0.0
    %306 = vmatpush1.msra.mxu0 0.0
    %307 = vmatprep.subr.mxu0 0.0
    %308 = vmatpush1.msra.mxu0 0.0
    %309 = vmatprep.subr.mxu0 0.0
    %310 = vmatpush1.msra.mxu0 0.0
    %311 = vmatprep.mubr.f32.mxu0 0.0
    %312 = vmatmul.mubr.f32.gmra.mrb[0].mxu0 %v223
    %v313 = vpop.f32.mrb[0].mxu0
    %v314 = vadd.f32 %v245, %v313
    %v315 = vpop.f32.mrb[0].mxu0
    %316 = vdwg.mxu0
    %317 = vst [vmem:[#allocation8] sm:$0xff] %v314
    // Predicated region
    $region34: #{tpu_custom_call.1} parent=1 // pred_check
      _
    $region35: #{tpu_custom_call.1} parent=1 // pred_check_branch
      %319 = sbr.rel (0) target = $region37
    $region36: #{tpu_custom_call.1} parent=1 // pred_region
      %s321 = ssub.s32 128, 128
      %322 = vsyncadd [#allocation4], %s321
      %s324 = sshll.u32 [#allocation8], 4
      %s325 = int_to_ptr.vmem [resolvable:$true] %s324
      %327 = dma.vmem_to_hbm [thread:$0]  %s325, 128, %s5, [#allocation4]
    $region37: #{tpu_custom_call.1} parent=1 // pred_fallthru
      _
    // Predicated region
    $region38: #{tpu_custom_call.1} parent=1 // pred_check
      _
    $region39: #{tpu_custom_call.1} parent=1 // pred_check_branch
      %329 = sbr.rel (0) target = $region41
    $region40: #{tpu_custom_call.1} parent=1 // pred_region
      %330 = dma.done [#allocation4], 128
    $region41: #{tpu_custom_call.1} parent=1 // pred_fallthru
      _
    %331 = vsyncpa [#allocation3], 1
    %332 = vsyncpa [#allocation6], 1
    %333 = vsyncpa [#allocation4], 1

</llo_original>
